<compile_context>
chip_gen: v7x
topology: tpu7x:2x2x1
jax: 0.10.0
libtpu: 0.0.40
codegen_flags: <defaults>
</compile_context>

<pallas_src>
import math
import functools

import jax
import jax.numpy as jnp
from jax.experimental import pallas as pl
from jax.experimental.pallas import tpu as pltpu

_LANE = 128
_SUBLANE = 8


def _cdiv(a: int, b: int) -> int:
    return -(-a // b)


def _round_up(a: int, b: int) -> int:
    return _cdiv(a, b) * b


def build_sinusoidal_pe(max_len: int, d_model: int) -> jnp.ndarray:
    """Deterministic buffer setup (plain JAX glue) — matches the torch
    registered buffer `pe` exactly."""
    position = jnp.arange(max_len, dtype=jnp.float32)[:, None]           # [L, 1]
    div_term = jnp.exp(
        jnp.arange(0, d_model, 2, dtype=jnp.float32)
        * -(math.log(10000.0) / d_model)
    )                                                                    # [D/2]
    pe = jnp.zeros((max_len, d_model), dtype=jnp.float32)
    pe = pe.at[:, 0::2].set(jnp.sin(position * div_term))
    pe = pe.at[:, 1::2].set(jnp.cos(position * div_term))
    return pe                                                            # [L, D]


def _pe_add_kernel(x_ref, pe_ref, o_ref, *, scale):
    # Fused scale + positional-encoding add; one VPU pass, f32 math.
    x = x_ref[...].astype(jnp.float32)
    pe = pe_ref[...].astype(jnp.float32)
    o_ref[...] = (x * scale + pe).astype(o_ref.dtype)


def _pick_lane_tile(C: int, block_rows: int, b_blocks: int, itemsize: int,
                    vmem_budget_bytes: int = 8 * 1024 * 1024) -> int:
    """Lane-tile size (multiple of 128, or full extent when C <= 128) chosen
    from the real (8,128)-padded VMEM footprint of all pipelined buffers."""
    if C <= _LANE:
        return C  # full extent: legal block shape, tiny problem anyway
    pad_rows_x = _round_up(block_rows, _SUBLANE)   # x and out blocks
    pad_rows_pe = _SUBLANE                          # pe block (rows pad to 8)
    # (x + out + pe) blocks, each double buffered, f32/bf16 itemsize.
    bytes_per_lane = 2 * (2 * pad_rows_x + pad_rows_pe) * itemsize
    max_tile = max(vmem_budget_bytes // bytes_per_lane, _LANE)
    tile = min(C, max_tile)
    tile = max((tile // _LANE) * _LANE, _LANE)
    # v7x megacore: ensure at least 2 grid steps to shard across both TCs.
    if b_blocks * _cdiv(C, tile) < 2:
        tile = _round_up(_cdiv(C, 2), _LANE)        # < C here, gives 2 steps
    return tile


def positional_encoding_add(x: jnp.ndarray, pe_table: jnp.ndarray) -> jnp.ndarray:
    """Equivalent of PositionalEncoding(pe_type='add').forward in eval mode.

    x: [B, T, d_model]
    pe_table: [max_len, d_model] float32, max_len >= T
    """
    B, T, D = x.shape
    max_len, d_pe = pe_table.shape
    if d_pe != D:
        raise ValueError(f"pe_table d_model {d_pe} != input d_model {D}")
    if max_len < T:
        raise ValueError(f"pe_table max_len {max_len} < sequence length {T}")

    scale = math.sqrt(D)
    F = T * D
    itemsize = jnp.dtype(x.dtype).itemsize

    # Fold 8 feature chunks into the sublane axis when possible (free,
    # row-major reshape) so blocks are sublane-dense even for tiny batches.
    sub = _SUBLANE if F % _SUBLANE == 0 else 1
    C = F // sub
    x2 = x.reshape(B * sub, C)
    pe2 = pe_table[:T].reshape(sub, C)

    if sub == _SUBLANE:
        b_blocks, block_rows = B, _SUBLANE
    else:
        b_blocks, block_rows = 1, B

    tile_c = _pick_lane_tile(C, block_rows, b_blocks, itemsize)
    n_c = _cdiv(C, tile_c)                 # ragged last block is masked
    grid = (n_c, b_blocks)                 # batch innermost: pe DMA elided

    kernel = functools.partial(_pe_add_kernel, scale=scale)
    out2 = pl.pallas_call(
        kernel,
        out_shape=jax.ShapeDtypeStruct(x2.shape, x.dtype),
        grid=grid,
        in_specs=[
            pl.BlockSpec((block_rows, tile_c), lambda f, b: (b, f)),  # x
            pl.BlockSpec((sub, tile_c), lambda f, b: (0, f)),         # pe
        ],
        out_specs=pl.BlockSpec((block_rows, tile_c), lambda f, b: (b, f)),
        input_output_aliases={0: 0},       # pure in-place update of x
        compiler_params=pltpu.CompilerParams(
            dimension_semantics=("parallel", "parallel"),
        ),
        cost_estimate=pl.CostEstimate(
            flops=2 * B * F,
            transcendentals=0,
            bytes_accessed=(2 * B * F + F) * itemsize,
        ),
    )(x2, pe2)

    return out2.reshape(B, T, D)

# TODO(synk): dropout is identity in eval mode; training-mode dropout and the
# 'concat' / '1dconvN' pe_type variants are not implemented here.


if __name__ == "__main__":
    # Small shapes consistent with the module: [B, T, d_model]
    B, T, D = 2, 8, 32
    MAX_LEN = 16

    key = jax.random.PRNGKey(0)
    x = jax.random.normal(key, (B, T, D), dtype=jnp.float32)

    pe_table = build_sinusoidal_pe(MAX_LEN, D)

    out = positional_encoding_add(x, pe_table)
    out = jax.block_until_ready(out)

    # Pure-JAX reference of the exact PyTorch forward (pe_type='add', eval):
    ref = x * math.sqrt(D) + pe_table[:T][None, :, :]
    assert out.shape == (B, T, D)
    assert jnp.allclose(out, ref, atol=1e-5, rtol=1e-5), "mismatch vs reference"

    print("KERNEL_OK")
</pallas_src>

<mosaic_0001>
module attributes {stable_mosaic.version = 11 : i64} {
  func.func @_pe_add_kernel(%arg0: i32, %arg1: i32, %arg2: memref<8x32xf32, #tpu.memory_space<vmem>>, %arg3: memref<8x32xf32, #tpu.memory_space<vmem>>, %arg4: memref<8x32xf32, #tpu.memory_space<vmem>>) attributes {dimension_semantics = [#tpu.dimension_semantics<parallel>, #tpu.dimension_semantics<parallel>], iteration_bounds = array<i64: 1, 2>, scalar_prefetch = 0 : i64, scratch_operands = 0 : i64, tpu.core_type = #tpu.core_type<tc>, window_params = [{transform_indices = @transform_0, window_bounds = array<i64: 8, 32>}, {transform_indices = @transform_1, window_bounds = array<i64: 8, 32>}, {transform_indices = @transform_2, window_bounds = array<i64: 8, 32>}]} {
    %c0 = arith.constant 0 : index
    %c0_0 = arith.constant 0 : index
    %0 = vector.load %arg2[%c0, %c0_0] : memref<8x32xf32, #tpu.memory_space<vmem>>, vector<8x32xf32>
    %c0_1 = arith.constant 0 : index
    %c0_2 = arith.constant 0 : index
    %1 = vector.load %arg3[%c0_1, %c0_2] : memref<8x32xf32, #tpu.memory_space<vmem>>, vector<8x32xf32>
    %cst = arith.constant 5.65685415 : f32
    %2 = vector.broadcast %cst : f32 to vector<8x32xf32>
    %3 = arith.mulf %0, %2 : vector<8x32xf32>
    %4 = arith.addf %3, %1 : vector<8x32xf32>
    %c0_3 = arith.constant 0 : index
    %c0_4 = arith.constant 0 : index
    %5 = vector.load %arg4[%c0_3, %c0_4] : memref<8x32xf32, #tpu.memory_space<vmem>>, vector<8x32xf32>
    tpu.vector_store %arg4[%c0_3, %c0_4], %4 {strides = array<i32>} : memref<8x32xf32, #tpu.memory_space<vmem>>, vector<8x32xf32>,
    return
  }
  func.func @transform_0(%arg0: i32, %arg1: i32) -> (i32, i32) {
    %c0_i32 = arith.constant 0 : i32
    return %arg1, %arg0 : i32, i32
  }
  func.func @transform_1(%arg0: i32, %arg1: i32) -> (i32, i32) {
    %c0_i32 = arith.constant 0 : i32
    %c0_i32_0 = arith.constant 0 : i32
    return %c0_i32, %arg0 : i32, i32
  }
  func.func @transform_2(%arg0: i32, %arg1: i32) -> (i32, i32) {
    %c0_i32 = arith.constant 0 : i32
    return %arg1, %arg0 : i32, i32
  }
}

</mosaic_0001>

<llo_original>
// kernel: tpu_custom_call.1
$region0: #{tpu_custom_call.1}
  #allocation0 [shape = 'u32[]', space=smem, size = 0x4, offset = 0x4, fixed_abs, tag = 'smem constant byte address 0x4 - core index']
  #allocation1 [shape = 'u32[144,128]{1,0:T(1,128)}', space=vmem, size = 0x12000, scoped, tag = 'internal scratch']
  %s0 = inlined_call_operand.hbm [shape: f32[16,32], index: 0, kind: input, shape index: {}, may-alias: {0,2}]
  %s1 = inlined_call_operand.vmem [shape: f32[8,32], index: 1, kind: input, shape index: {}]
  %s2 = inlined_call_operand.hbm [shape: f32[16,32], index: 2, kind: output, shape index: {}, may-alias: {0,2}]
  %s3 = sld [smem:[#allocation0]]
  $region45: #{tpu_custom_call.1} parent=0
    _
  %s5 = ssub.s32 1, %s3
  %s6 = scalar_select 0, %s5, %s3
  $region1: #{tpu_custom_call.1} parent=0
    #allocation2 [shape = 'u8[8192]{0}', space=vmem, size = 0x2000, scoped, tag = 'input window, operand 0']
    #allocation3 [shape = 's32[2]{0}', space=sflag, size = 0x8, scoped, tag = 'scoped memory for tpu_custom_call.1']
    #allocation4 [shape = 's32[2]{0}', space=sflag, size = 0x8, scoped, tag = 'scoped memory for tpu_custom_call.1']
    #allocation5 [shape = 'u8[8192]{0}', space=vmem, size = 0x2000, scoped, tag = 'output window, operand 0']
    %7 = vsyncpa [#allocation3], 0
    %s8 = scalar_lea.sflag [#allocation3], 1
    %9 = vsyncpa %s8, 0
    %10 = vsyncpa [#allocation4], 0
    %s11 = scalar_lea.sflag [#allocation4], 1
    %12 = vsyncpa %s11, 0
    loop: start=0, step=1, limit=4
    $region2: #{tpu_custom_call.1} parent=1 // loop_pre_header
      _
    $region3: #{tpu_custom_call.1} parent=1 // loop_header
      %s14 = sphi 0, %s18
      %p15 = scmp.ge.s32.totalorder %s14, 4
      %s21 = sphi 0, %s33
      %s22 = sphi 0, %s29
      %s23 = sphi 0, %s21
      %s24 = sphi 0, %s22
      %s25 = sphi 0, %s23
      %s26 = sphi 0, %s24
      %s38 = sphi 0, %s40
      %s41 = sphi 0, %s38
      %s42 = sphi 0, %s41
      %s58 = sphi 0, %s42
      %s64 = sphi 0, %s66
      %s67 = sphi 0, %s64
      %s68 = sphi 0, %s67
      %s84 = sphi 0, %s68
      %s92 = sphi 0, %s94
      %s95 = sphi 0, %s92
      %s96 = sphi 0, %s95
      %s112 = sphi 0, %s96
    $region4: #{tpu_custom_call.1} parent=1 // loop_header_branch
      %17 = sbr.rel (%p15) target = $region8
    $region5: #{tpu_custom_call.1} parent=1 // loop_body
      %s19 = ssub.s32 %s14, 1
      %s20 = ssub.s32 %s14, 2
      %s27 = sadd.s32 1, %s22
      %p28 = scmp.ge.s32.totalorder %s27, 2
      %s29 = scalar_select %p28, 0, %s27
      %s30 = sadd.s32 1, %s21
      %s31 = scalar_select %p28, %s30, %s21
      %p32 = scmp.ge.s32.totalorder %s31, 1
      %s33 = scalar_select %p32, 0, %s31
      %s34 = ssub.s32 %s22, %s29
      %s35 = ssub.s32 %s21, %s33
      %s36 = sor.u32 %s34, %s35
      %p37 = scmp.eq.s32.totalorder %s36, 0
      %s39 = sadd.s32 %s38, 1
      %s40 = scalar_select %p37, %s38, %s39
      %p43 = pneg %p37
      %p44 = scmp.eq.s32.totalorder %s14, 1
      %p45 = por %p43, %p44
      %p46 = scmp.ne.s32.totalorder %s38, %s41
      %p47 = scmp.eq.s32.totalorder %s14, 0
      %p48 = por %p46, %p47
      %p49 = scmp.ne.s32.totalorder %s38, %s41
      %p50 = scmp.eq.s32.totalorder %s19, 1
      %p51 = por %p49, %p50
      %p52 = scmp.ne.s32.totalorder %s41, %s42
      %p53 = scmp.eq.s32.totalorder %s19, 0
      %p54 = por %p52, %p53
      %p55 = scmp.ne.s32.totalorder %s41, %s42
      %p56 = scmp.eq.s32.totalorder %s20, 1
      %p57 = por %p55, %p56
      %p59 = scmp.ne.s32.totalorder %s42, %s58
      %p60 = scmp.eq.s32.totalorder %s20, 0
      %p61 = por %p59, %p60
      %s62 = ssub.s32 %s21, %s33
      %p63 = scmp.eq.s32.totalorder %s62, 0
      %s65 = sadd.s32 %s64, 1
      %s66 = scalar_select %p63, %s64, %s65
      %p69 = pneg %p63
      %p70 = scmp.eq.s32.totalorder %s14, 1
      %p71 = por %p69, %p70
      %p72 = scmp.ne.s32.totalorder %s64, %s67
      %p73 = scmp.eq.s32.totalorder %s14, 0
      %p74 = por %p72, %p73
      %p75 = scmp.ne.s32.totalorder %s64, %s67
      %p76 = scmp.eq.s32.totalorder %s19, 1
      %p77 = por %p75, %p76
      %p78 = scmp.ne.s32.totalorder %s67, %s68
      %p79 = scmp.eq.s32.totalorder %s19, 0
      %p80 = por %p78, %p79
      %p81 = scmp.ne.s32.totalorder %s67, %s68
      %p82 = scmp.eq.s32.totalorder %s20, 1
      %p83 = por %p81, %p82
      %p85 = scmp.ne.s32.totalorder %s68, %s84
      %p86 = scmp.eq.s32.totalorder %s20, 0
      %p87 = por %p85, %p86
      %s88 = ssub.s32 %s22, %s29
      %s89 = ssub.s32 %s21, %s33
      %s90 = sor.u32 %s88, %s89
      %p91 = scmp.eq.s32.totalorder %s90, 0
      %s93 = sadd.s32 %s92, 1
      %s94 = scalar_select %p91, %s92, %s93
      %p97 = pneg %p91
      %p98 = scmp.eq.s32.totalorder %s14, 1
      %p99 = por %p97, %p98
      %p100 = scmp.ne.s32.totalorder %s92, %s95
      %p101 = scmp.eq.s32.totalorder %s14, 0
      %p102 = por %p100, %p101
      %p103 = scmp.ne.s32.totalorder %s92, %s95
      %p104 = scmp.eq.s32.totalorder %s19, 1
      %p105 = por %p103, %p104
      %p106 = scmp.ne.s32.totalorder %s95, %s96
      %p107 = scmp.eq.s32.totalorder %s19, 0
      %p108 = por %p106, %p107
      %p109 = scmp.ne.s32.totalorder %s95, %s96
      %p110 = scmp.eq.s32.totalorder %s20, 1
      %p111 = por %p109, %p110
      %p113 = scmp.ne.s32.totalorder %s96, %s112
      %p114 = scmp.eq.s32.totalorder %s20, 0
      %p115 = por %p113, %p114
      %p116 = scmp.le.s32.totalorder 1, %s14
      %p117 = scmp.lt.s32.totalorder %s14, 3
      %p118 = pnand %p116, %p117
      %p119 = pneg %p118
      // Predicated region
      $region9: #{tpu_custom_call.1} parent=5 // pred_check
        _
      $region10: #{tpu_custom_call.1} parent=5 // pred_check_branch
        %121 = sbr.rel (%p118) target = $region12
      $region11: #{tpu_custom_call.1} parent=5 // pred_region
        %s122 = ssub.s32 %s14, 1
        // Predicated region
        $region13: #{tpu_custom_call.1} parent=11 // pred_check
          %p123 = pneg %p80
        $region14: #{tpu_custom_call.1} parent=11 // pred_check_branch
          %125 = sbr.rel (%p123) target = $region16
        $region15: #{tpu_custom_call.1} parent=11 // pred_region
          %p126 = scmp.lt.s32.totalorder %s23, 0
          %s127 = scalar_select %p126, %s23, 0
          %s128 = smul.addr %s127, 8
          %s129 = scalar_lea.vmem %s1, %s128
        $region16: #{tpu_custom_call.1} parent=11 // pred_fallthru
          _
      $region12: #{tpu_custom_call.1} parent=5 // pred_fallthru
        _
      %p130 = scmp.lt.s32.totalorder %s14, 2
      // Predicated region
      $region17: #{tpu_custom_call.1} parent=5 // pred_check
        %p131 = pneg %p130
      $region18: #{tpu_custom_call.1} parent=5 // pred_check_branch
        %133 = sbr.rel (%p131) target = $region20
      $region19: #{tpu_custom_call.1} parent=5 // pred_region
        // Predicated region
        $region21: #{tpu_custom_call.1} parent=19 // pred_check
          %p134 = pneg %p48
        $region22: #{tpu_custom_call.1} parent=19 // pred_check_branch
          %136 = sbr.rel (%p134) target = $region24
        $region23: #{tpu_custom_call.1} parent=19 // pred_region
          %s137 = sand.u32 %s38, 1
          %s138 = scalar_lea.sflag [#allocation3], %s137
          %s139 = sand.u32 %s38, 1
          %s140 = smul.addr %s139, 8
          %s141 = scalar_lea.vmem [#allocation2], %s140
          %s143 = ssub.s32 128, 128
          %144 = vsyncadd %s138, %s143
          %s145 = sadd.s32 %s21, %s22
          %s146 = smul.addr %s145, 128
          %s147 = scalar_lea.hbm %s0, %s146
          %s149 = sshll.u32 %s141, 4
          %s150 = int_to_ptr.vmem [resolvable:$true] %s149
          %152 = dma.hbm_to_vmem [thread:$0]  %s147, 128, %s150, %s138
        $region24: #{tpu_custom_call.1} parent=19 // pred_fallthru
          _
      $region20: #{tpu_custom_call.1} parent=5 // pred_fallthru
        _
      %p153 = scmp.le.s32.totalorder 1, %s14
      %p154 = scmp.lt.s32.totalorder %s14, 3
      %p155 = pnand %p153, %p154
      %p156 = pneg %p155
      // Predicated region
      $region25: #{tpu_custom_call.1} parent=5 // pred_check
        _
      $region26: #{tpu_custom_call.1} parent=5 // pred_check_branch
        %158 = sbr.rel (%p155) target = $region28
      $region27: #{tpu_custom_call.1} parent=5 // pred_region
        %s159 = ssub.s32 %s14, 1
        %s160 = sand.u32 %s41, 1
        %s161 = scalar_lea.sflag [#allocation3], %s160
        %s162 = sand.u32 %s41, 1
        %s163 = smul.addr %s162, 8
        %s164 = scalar_lea.vmem [#allocation2], %s163
        // Predicated region
        $region29: #{tpu_custom_call.1} parent=27 // pred_check
          %p165 = pneg %p54
        $region30: #{tpu_custom_call.1} parent=27 // pred_check_branch
          %167 = sbr.rel (%p165) target = $region32
        $region31: #{tpu_custom_call.1} parent=27 // pred_region
          %168 = dma.done %s161, 128
        $region32: #{tpu_custom_call.1} parent=27 // pred_fallthru
          _
        %s169 = sand.u32 %s41, 1
        %s170 = scalar_lea.sflag [#allocation3], %s169
        %s171 = sand.u32 %s41, 1
        %s172 = smul.addr %s171, 8
        %s173 = scalar_lea.vmem [#allocation2], %s172
        %p174 = pneg %p54
        %p175 = pneg %p51
        %p176 = scmp.lt.s32.totalorder %s23, 0
        %s177 = scalar_select %p176, %s23, 0
        %s178 = smul.addr %s177, 8
        %s179 = scalar_lea.vmem %s1, %s178
        %p180 = pneg %p80
        %p181 = pneg %p77
        %p182 = pneg %p108
        %p183 = pneg %p105
        %s184 = sand.u32 %s95, 1
        %s185 = scalar_lea.sflag [#allocation4], %s184
        %s186 = sand.u32 %s95, 1
        %s187 = smul.addr %s186, 8
        %s188 = scalar_lea.vmem [#allocation5], %s187
        %p189 = scmp.lt.s32.totalorder %s23, 0
        %s190 = scalar_select %p189, %s23, 0
        %s191 = smul.addr %s190, 8
        %s192 = scalar_lea.vmem %s1, %s191
        %v193 = vld [vmem:[%s164] sm:$0xff]
        %v194 = vld [vmem:[%s192] sm:$0xff]
        %v195 = vmul.f32 %v193, 5.656854
        %v196 = vadd.f32 %v195, %v194
        %vm197 = vcmask 261120
        %198 = vst.msk [vmem:[%s188] sm:$0xff] %vm197, %v196
        %s199 = sand.u32 %s95, 1
        %s200 = scalar_lea.sflag [#allocation4], %s199
        %s201 = sand.u32 %s95, 1
        %s202 = smul.addr %s201, 8
        %s203 = scalar_lea.vmem [#allocation5], %s202
        // Predicated region
        $region33: #{tpu_custom_call.1} parent=27 // pred_check
          %p204 = pneg %p105
        $region34: #{tpu_custom_call.1} parent=27 // pred_check_branch
          %206 = sbr.rel (%p204) target = $region36
        $region35: #{tpu_custom_call.1} parent=27 // pred_region
          %s208 = ssub.s32 128, 128
          %209 = vsyncadd %s200, %s208
          %s210 = sadd.s32 %s23, %s24
          %s211 = smul.addr %s210, 128
          %s212 = scalar_lea.hbm %s2, %s211
          %s214 = sshll.u32 %s203, 4
          %s215 = int_to_ptr.vmem [resolvable:$true] %s214
          %217 = dma.vmem_to_hbm [thread:$0]  %s215, 128, %s212, %s200
        $region36: #{tpu_custom_call.1} parent=27 // pred_fallthru
          _
      $region28: #{tpu_custom_call.1} parent=5 // pred_fallthru
        _
      %p218 = scmp.le.s32.totalorder 2, %s14
      // Predicated region
      $region37: #{tpu_custom_call.1} parent=5 // pred_check
        %p219 = pneg %p218
      $region38: #{tpu_custom_call.1} parent=5 // pred_check_branch
        %221 = sbr.rel (%p219) target = $region40
      $region39: #{tpu_custom_call.1} parent=5 // pred_region
        %s222 = ssub.s32 %s14, 2
        // Predicated region
        $region41: #{tpu_custom_call.1} parent=39 // pred_check
          %p223 = pneg %p111
        $region42: #{tpu_custom_call.1} parent=39 // pred_check_branch
          %225 = sbr.rel (%p223) target = $region44
        $region43: #{tpu_custom_call.1} parent=39 // pred_region
          %s226 = sand.u32 %s96, 1
          %s227 = scalar_lea.sflag [#allocation4], %s226
          %s228 = sand.u32 %s96, 1
          %s229 = smul.addr %s228, 8
          %s230 = scalar_lea.vmem [#allocation5], %s229
          %231 = dma.done %s227, 128
        $region44: #{tpu_custom_call.1} parent=39 // pred_fallthru
          _
      $region40: #{tpu_custom_call.1} parent=5 // pred_fallthru
        _
    $region6: #{tpu_custom_call.1} parent=1 // loop_footer
      %s18 = sadd.s32 1, %s14
    $region7: #{tpu_custom_call.1} parent=1 // loop_footer_branch
      %13 = sbr.rel target = $region3
    $region8: #{tpu_custom_call.1} parent=1 // loop_exit
      _
    %232 = vsyncpa [#allocation3], 1
    %s233 = scalar_lea.sflag [#allocation3], 1
    %234 = vsyncpa %s233, 1
    %235 = vsyncpa [#allocation4], 1
    %s236 = scalar_lea.sflag [#allocation4], 1
    %237 = vsyncpa %s236, 1

</llo_original>
